<compile_context>
chip_gen: v6e
topology: v6e:2x2x1
jax: 0.10.0
libtpu: 0.0.40
codegen_flags: <defaults>
</compile_context>

<pallas_src>
import jax
import jax.numpy as jnp
from jax.experimental import pallas as pl
from jax.experimental.pallas import tpu as pltpu

_LANE = 128
_STEP_BYTES = 8 * 1024 * 1024      # VMEM budget for all tiled inputs of ONE grid step (one buffer)
_VMEM_LIMIT = 48 * 1024 * 1024     # < 64 MiB physical VMEM on v7x; ample headroom on v5e/v6e


def _round_up(x, m):
    return (x + m - 1) // m * m


def _sublane_pad(c, dtype):
    """Sublane-padded class count for a (1, C, ts) VMEM block of this dtype."""
    itemsize = jnp.dtype(dtype).itemsize
    pack = max(1, 4 // itemsize)            # elements packed per 32-bit sublane word
    return _round_up(c, 8 * pack), itemsize


def _spatial_tile(hw, c, dtype, masked, step_bytes):
    """Largest lane-aligned spatial tile whose per-step VMEM footprint (including
    sublane padding and, if masked, the targets_new block) fits the budget.
    Never pads HBM: the ragged last tile is masked inside the kernel."""
    c_pad, itemsize = _sublane_pad(c, dtype)
    per_elem = 2 * c_pad * itemsize         # outputs + targets blocks
    if masked:
        per_elem += 8 * 4                   # (1,1,ts) int32 mask block (8 sublanes)
    ts_max = max(_LANE, (step_bytes // per_elem) // _LANE * _LANE)
    if hw <= ts_max:
        return hw, 1                        # single full-extent tile (always a legal block dim)
    return ts_max, -(-hw // ts_max)


# ---------------------------------------------------------------------------
# Kernels
# ---------------------------------------------------------------------------
def _make_kernels(hw, ts, s_red):
    """Build kernels closed over the static spatial geometry (hw, ts, s_red)."""

    def _valid():
        # Global spatial index of each lane in this tile; masks the ragged tail
        # and any redundant (clamped) steps of the spatial-parallel split.
        p = pl.program_id(1)
        s = pl.program_id(2)
        base = (p * s_red + s) * ts
        idx = jax.lax.broadcasted_iota(jnp.int32, (1, 1, ts), 2)
        return (base + idx) < hw

    def unmasked(o_ref, t_ref, loss_ref, tgt_ref):
        @pl.when(pl.program_id(2) == 0)
        def _init():
            loss_ref[...] = jnp.zeros_like(loss_ref)
            tgt_ref[...] = jnp.zeros_like(tgt_ref)

        valid = _valid()                                   # (1, 1, ts)
        o = o_ref[...].astype(jnp.float32)                 # (1, C, ts)
        t = t_ref[...].astype(jnp.float32)                 # (1, C, ts)
        loss_ref[...] += jnp.sum(jnp.where(valid, t * o, 0.0), axis=2, keepdims=True)
        tgt_ref[...] += jnp.sum(jnp.where(valid, t, 0.0), axis=2, keepdims=True)

    def masked(o_ref, t_ref, tn_ref, loss_ref, tgt_ref, msum_ref):
        @pl.when(pl.program_id(2) == 0)
        def _init():
            loss_ref[...] = jnp.zeros_like(loss_ref)
            tgt_ref[...] = jnp.zeros_like(tgt_ref)
            msum_ref[...] = jnp.zeros_like(msum_ref)

        keep = jnp.logical_and(_valid(), tn_ref[...] == 255)   # (1, 1, ts)
        o = o_ref[...].astype(jnp.float32)
        t = t_ref[...].astype(jnp.float32)
        loss_ref[...] += jnp.sum(jnp.where(keep, t * o, 0.0), axis=2, keepdims=True)
        tgt_ref[...] += jnp.sum(jnp.where(keep, t, 0.0), axis=2, keepdims=True)
        msum_ref[...] += jnp.sum(jnp.where(keep, 1.0, 0.0), axis=2, keepdims=True)

    return unmasked, masked


# ---------------------------------------------------------------------------
# Wrapper
# ---------------------------------------------------------------------------
def kd_ce_loss(outputs, targets, targets_new=None, *, weight=None, temp=1, norm=None,
               step_bytes=_STEP_BYTES):
    """JAX/Pallas equivalent of KnowledgeDistillationCELoss.forward."""
    assert outputs.shape == targets.shape, "shapes of outputs and targets have to agree"
    assert isinstance(temp, int), "temp has to be of type int"
    N, C = outputs.shape[0], outputs.shape[1]
    assert weight is None or weight.shape[0] == C, "provide weights for all classes or none"

    hw = 1
    for d in outputs.shape[2:]:
        hw *= d

    o2 = outputs.reshape(N, C, hw)                   # free reshapes, no HBM copy
    t2 = targets.reshape(N, C, hw)

    use_mask = targets_new is not None
    ts, n_tiles = _spatial_tile(hw, C, outputs.dtype, use_mask, step_bytes)

    # Spatial-parallel split keeps both v7x TensorCores busy when N == 1.
    P = 2 if (N == 1 and n_tiles >= 2) else 1
    s_red = -(-n_tiles // P)
    grid = (N, P, s_red)

    unmasked_k, masked_k = _make_kernels(hw, ts, s_red)

    def _sp(p, s):
        # Clamp so redundant steps of the parallel split re-read an in-bounds tile;
        # the kernel's global-index mask zeroes their contribution.
        return jnp.minimum(p * s_red + s, n_tiles - 1)

    in_spec = pl.BlockSpec((1, C, ts), lambda n, p, s: (n, 0, _sp(p, s)))
    acc_spec = pl.BlockSpec((1, C, 1), lambda n, p, s: (n * P + p, 0, 0))
    cparams = pltpu.CompilerParams(
        dimension_semantics=("parallel", "parallel", "arbitrary"),
        vmem_limit_bytes=_VMEM_LIMIT,
    )
    # TODO(synk): optionally try pipeline_mode=pl.Buffered(3) on the two input specs
    # once block sizes are frozen (few-% DMA-jitter win, VMEM headroom exists).

    if not use_mask:
        sum_to, sum_t = pl.pallas_call(
            unmasked_k,
            out_shape=(
                jax.ShapeDtypeStruct((N * P, C, 1), jnp.float32),
                jax.ShapeDtypeStruct((N * P, C, 1), jnp.float32),
            ),
            grid_spec=pltpu.PrefetchScalarGridSpec(
                num_scalar_prefetch=0, grid=grid,
                in_specs=[in_spec, in_spec],
                out_specs=[acc_spec, acc_spec]),
            compiler_params=cparams,
        )(o2, t2)
        denom_corr = jnp.float32(0.0)
    else:
        tn2 = targets_new.reshape(N, 1, hw).astype(jnp.int32)   # no f32 mask materialized
        tn_spec = pl.BlockSpec((1, 1, ts), lambda n, p, s: (n, 0, _sp(p, s)))
        msum_spec = pl.BlockSpec((1, 1, 1), lambda n, p, s: (n * P + p, 0, 0))
        sum_to, sum_t, msum = pl.pallas_call(
            masked_k,
            out_shape=(
                jax.ShapeDtypeStruct((N * P, C, 1), jnp.float32),
                jax.ShapeDtypeStruct((N * P, C, 1), jnp.float32),
                jax.ShapeDtypeStruct((N * P, 1, 1), jnp.float32),
            ),
            grid_spec=pltpu.PrefetchScalarGridSpec(
                num_scalar_prefetch=0, grid=grid,
                in_specs=[in_spec, in_spec, tn_spec],
                out_specs=[acc_spec, acc_spec, msum_spec]),
            compiler_params=cparams,
        )(o2, t2, tn2)
        # denom_corr = numel(mask) - sum(mask), i.e. #pixels where targets_new != 255
        denom_corr = jnp.float32(N * hw) - jnp.sum(msum)

    loss_c = -jnp.sum(sum_to.reshape(N * P, C), axis=0)     # per-class sum of (-targets*outputs)
    tgt_c = jnp.sum(sum_t.reshape(N * P, C), axis=0)        # per-class sum of (masked) targets

    if weight is not None:
        # NOTE: the literal PyTorch denominator line reuses `loss.dim()` after `loss`
        # became a scalar and would error for >2-D inputs; we implement the intended
        # per-class reduction (identical for 2-D inputs).
        w = weight.astype(jnp.float32)
        loss = jnp.sum(loss_c * w) / jnp.sum(tgt_c * w)
    else:
        if norm == "BWH":
            denom_corr = jnp.float32(0.0)
        loss = jnp.sum(loss_c) / (jnp.float32(N * hw) - denom_corr)

    return (temp ** 2) * loss


# ---------------------------------------------------------------------------
# Pure-JAX reference (mirrors the PyTorch forward) for correctness checking
# ---------------------------------------------------------------------------
def kd_ce_loss_ref(outputs, targets, targets_new=None, *, weight=None, temp=1, norm=None):
    outputs = outputs.astype(jnp.float32)
    targets = targets.astype(jnp.float32)
    denom_corr = jnp.float32(0.0)
    if targets_new is not None:
        mask = (targets_new == 255).astype(jnp.float32)
        denom_corr = jnp.float32(mask.size) - jnp.sum(mask)
        mask = mask.reshape(mask.shape[0], 1, *mask.shape[1:])
        targets = targets * mask
    loss = -targets * outputs
    if weight is not None:
        red = (0,) + tuple(range(2, loss.ndim))
        num = jnp.sum(jnp.sum(loss, axis=red) * weight)
        den = jnp.sum(jnp.sum(targets, axis=red) * weight)
        loss = num / den
    else:
        if norm == "BWH":
            denom_corr = jnp.float32(0.0)
        n_el = loss.shape[0]
        for d in loss.shape[2:]:
            n_el *= d
        loss = jnp.sum(loss) / (jnp.float32(n_el) - denom_corr)
    return (temp ** 2) * loss


if __name__ == "__main__":
    key = jax.random.PRNGKey(0)
    k1, k2, k3, k4, k5, k6 = jax.random.split(key, 6)
    N, C, H, W = 2, 4, 16, 16

    student_logits = jax.random.normal(k1, (N, C, H, W), dtype=jnp.float32)
    teacher_logits = jax.random.normal(k2, (N, C, H, W), dtype=jnp.float32)
    outputs = jax.nn.log_softmax(student_logits, axis=1)   # student log-probs
    targets = jax.nn.softmax(teacher_logits, axis=1)       # teacher soft targets

    # 1) default path: weight=None, targets_new=None, temp=1, norm=None
    loss = jax.block_until_ready(kd_ce_loss(outputs, targets))
    ref = kd_ce_loss_ref(outputs, targets)
    assert jnp.allclose(loss, ref, rtol=1e-5, atol=1e-6), (loss, ref)

    # 2) masked path (targets_new) + temperature
    targets_new = jnp.where(jax.random.uniform(k3, (N, H, W)) > 0.5, 255, 1).astype(jnp.int32)
    loss2 = jax.block_until_ready(kd_ce_loss(outputs, targets, targets_new, temp=2))
    ref2 = kd_ce_loss_ref(outputs, targets, targets_new, temp=2)
    assert jnp.allclose(loss2, ref2, rtol=1e-5, atol=1e-6), (loss2, ref2)

    # 3) class-weighted path (+ mask)
    weight = jnp.linspace(0.5, 1.5, C).astype(jnp.float32)
    loss3 = jax.block_until_ready(kd_ce_loss(outputs, targets, targets_new, weight=weight, temp=2))
    ref3 = kd_ce_loss_ref(outputs, targets, targets_new, weight=weight, temp=2)
    assert jnp.allclose(loss3, ref3, rtol=1e-5, atol=1e-6), (loss3, ref3)

    # 4) multi-tile path with a ragged tail, N=1 spatial-parallel split (clamped
    #    redundant step), masked + weighted.  Small step_bytes forces many tiles.
    N4, C4, H4, W4 = 1, 3, 26, 100                       # hw=2600 -> 21 tiles of 128 (odd)
    o4 = jax.nn.log_softmax(jax.random.normal(k4, (N4, C4, H4, W4), dtype=jnp.float32), axis=1)
    t4 = jax.nn.softmax(jax.random.normal(k5, (N4, C4, H4, W4), dtype=jnp.float32), axis=1)
    tn4 = jnp.where(jax.random.uniform(k6, (N4, H4, W4)) > 0.3, 255, 7).astype(jnp.int32)
    w4 = jnp.linspace(0.25, 2.0, C4).astype(jnp.float32)
    loss4 = jax.block_until_ready(
        kd_ce_loss(o4, t4, tn4, weight=w4, temp=3, step_bytes=8192))
    ref4 = kd_ce_loss_ref(o4, t4, tn4, weight=w4, temp=3)
    assert jnp.allclose(loss4, ref4, rtol=1e-5, atol=1e-6), (loss4, ref4)

    assert jnp.isfinite(loss) and jnp.isfinite(loss2) and jnp.isfinite(loss3) and jnp.isfinite(loss4)
    print("KERNEL_OK")
</pallas_src>

<mosaic_0001>
module attributes {stable_mosaic.version = 11 : i64} {
  func.func @unmasked(%arg0: i32, %arg1: i32, %arg2: i32, %arg3: memref<1x4x256xf32, #tpu.memory_space<vmem>>, %arg4: memref<1x4x256xf32, #tpu.memory_space<vmem>>, %arg5: memref<1x4x1xf32, #tpu.memory_space<vmem>>, %arg6: memref<1x4x1xf32, #tpu.memory_space<vmem>>) attributes {dimension_semantics = [#tpu.dimension_semantics<parallel>, #tpu.dimension_semantics<parallel>, #tpu.dimension_semantics<arbitrary>], iteration_bounds = array<i64: 2, 1, 1>, scalar_prefetch = 0 : i64, scratch_operands = 0 : i64, tpu.core_type = #tpu.core_type<tc>, window_params = [{transform_indices = @transform_0, window_bounds = array<i64: 1, 4, 256>}, {transform_indices = @transform_1, window_bounds = array<i64: 1, 4, 256>}, {transform_indices = @transform_2, window_bounds = array<i64: 1, 4, 1>}, {transform_indices = @transform_3, window_bounds = array<i64: 1, 4, 1>}]} {
    %c0_i32 = arith.constant 0 : i32
    %0 = arith.cmpi eq, %arg2, %c0_i32 : i32
    %1 = arith.extui %0 : i1 to i32
    %c0_i32_0 = arith.constant 0 : i32
    %2 = arith.cmpi ne, %1, %c0_i32_0 : i32
    scf.if %2 {
      %cst_22 = arith.constant 0.000000e+00 : f32
      %32 = vector.broadcast %cst_22 : f32 to vector<1x4x1xf32>
      %c0_23 = arith.constant 0 : index
      %c0_24 = arith.constant 0 : index
      %c0_25 = arith.constant 0 : index
      %33 = vector.load %arg5[%c0_23, %c0_24, %c0_25] : memref<1x4x1xf32, #tpu.memory_space<vmem>>, vector<1x4x1xf32>
      tpu.vector_store %arg5[%c0_23, %c0_24, %c0_25], %32 {strides = array<i32>} : memref<1x4x1xf32, #tpu.memory_space<vmem>>, vector<1x4x1xf32>,
      %cst_26 = arith.constant 0.000000e+00 : f32
      %34 = vector.broadcast %cst_26 : f32 to vector<1x4x1xf32>
      %c0_27 = arith.constant 0 : index
      %c0_28 = arith.constant 0 : index
      %c0_29 = arith.constant 0 : index
      %35 = vector.load %arg6[%c0_27, %c0_28, %c0_29] : memref<1x4x1xf32, #tpu.memory_space<vmem>>, vector<1x4x1xf32>
      tpu.vector_store %arg6[%c0_27, %c0_28, %c0_29], %34 {strides = array<i32>} : memref<1x4x1xf32, #tpu.memory_space<vmem>>, vector<1x4x1xf32>,
    } else {
    }
    %c1_i32 = arith.constant 1 : i32
    %3 = arith.muli %arg1, %c1_i32 : i32
    %4 = arith.addi %3, %arg2 : i32
    %c256_i32 = arith.constant 256 : i32
    %5 = arith.muli %4, %c256_i32 : i32
    %6 = tpu.iota {dimensions = array<i32: 2>} : vector<1x1x256xi32>
    %7 = vector.broadcast %5 : i32 to vector<1x1x256xi32>
    %8 = arith.addi %7, %6 : vector<1x1x256xi32>
    %c256_i32_1 = arith.constant 256 : i32
    %9 = vector.broadcast %c256_i32_1 : i32 to vector<1x1x256xi32>
    %10 = arith.cmpi slt, %8, %9 : vector<1x1x256xi32>
    %c0 = arith.constant 0 : index
    %c0_2 = arith.constant 0 : index
    %c0_3 = arith.constant 0 : index
    %11 = vector.load %arg3[%c0, %c0_2, %c0_3] : memref<1x4x256xf32, #tpu.memory_space<vmem>>, vector<1x4x256xf32>
    %c0_4 = arith.constant 0 : index
    %c0_5 = arith.constant 0 : index
    %c0_6 = arith.constant 0 : index
    %12 = vector.load %arg4[%c0_4, %c0_5, %c0_6] : memref<1x4x256xf32, #tpu.memory_space<vmem>>, vector<1x4x256xf32>
    %c0_7 = arith.constant 0 : index
    %c0_8 = arith.constant 0 : index
    %c0_9 = arith.constant 0 : index
    %13 = vector.load %arg5[%c0_7, %c0_8, %c0_9] : memref<1x4x1xf32, #tpu.memory_space<vmem>>, vector<1x4x1xf32>
    %14 = arith.mulf %12, %11 : vector<1x4x256xf32>
    %cst = arith.constant 0.000000e+00 : f32
    %15 = vector.shape_cast %10 : vector<1x1x256xi1> to vector<1x1x256xi1>
    %16 = vector.broadcast %15 : vector<1x1x256xi1> to vector<1x4x256xi1>
    %17 = vector.broadcast %cst : f32 to vector<1x4x256xf32>
    %18 = arith.select %16, %14, %17 : vector<1x4x256xi1>, vector<1x4x256xf32>
    %cst_10 = arith.constant dense<0.000000e+00> : vector<1x4xf32>
    %19 = vector.multi_reduction <add>, %18, %cst_10 [2] : vector<1x4x256xf32> to vector<1x4xf32>
    %20 = vector.shape_cast %19 : vector<1x4xf32> to vector<1x4x1xf32>
    %21 = arith.addf %13, %20 : vector<1x4x1xf32>
    %c0_11 = arith.constant 0 : index
    %c0_12 = arith.constant 0 : index
    %c0_13 = arith.constant 0 : index
    %22 = vector.load %arg5[%c0_11, %c0_12, %c0_13] : memref<1x4x1xf32, #tpu.memory_space<vmem>>, vector<1x4x1xf32>
    tpu.vector_store %arg5[%c0_11, %c0_12, %c0_13], %21 {strides = array<i32>} : memref<1x4x1xf32, #tpu.memory_space<vmem>>, vector<1x4x1xf32>,
    %c0_14 = arith.constant 0 : index
    %c0_15 = arith.constant 0 : index
    %c0_16 = arith.constant 0 : index
    %23 = vector.load %arg6[%c0_14, %c0_15, %c0_16] : memref<1x4x1xf32, #tpu.memory_space<vmem>>, vector<1x4x1xf32>
    %cst_17 = arith.constant 0.000000e+00 : f32
    %24 = vector.shape_cast %10 : vector<1x1x256xi1> to vector<1x1x256xi1>
    %25 = vector.broadcast %24 : vector<1x1x256xi1> to vector<1x4x256xi1>
    %26 = vector.broadcast %cst_17 : f32 to vector<1x4x256xf32>
    %27 = arith.select %25, %12, %26 : vector<1x4x256xi1>, vector<1x4x256xf32>
    %cst_18 = arith.constant dense<0.000000e+00> : vector<1x4xf32>
    %28 = vector.multi_reduction <add>, %27, %cst_18 [2] : vector<1x4x256xf32> to vector<1x4xf32>
    %29 = vector.shape_cast %28 : vector<1x4xf32> to vector<1x4x1xf32>
    %30 = arith.addf %23, %29 : vector<1x4x1xf32>
    %c0_19 = arith.constant 0 : index
    %c0_20 = arith.constant 0 : index
    %c0_21 = arith.constant 0 : index
    %31 = vector.load %arg6[%c0_19, %c0_20, %c0_21] : memref<1x4x1xf32, #tpu.memory_space<vmem>>, vector<1x4x1xf32>
    tpu.vector_store %arg6[%c0_19, %c0_20, %c0_21], %30 {strides = array<i32>} : memref<1x4x1xf32, #tpu.memory_space<vmem>>, vector<1x4x1xf32>,
    return
  }
  func.func @transform_0(%arg0: i32, %arg1: i32, %arg2: i32) -> (i32, i32, i32) {
    %c1_i32 = arith.constant 1 : i32
    %0 = arith.muli %arg1, %c1_i32 : i32
    %1 = arith.addi %0, %arg2 : i32
    %c0_i32 = arith.constant 0 : i32
    %2 = arith.minsi %1, %c0_i32 : i32
    %c0_i32_0 = arith.constant 0 : i32
    %c0_i32_1 = arith.constant 0 : i32
    return %arg0, %c0_i32_0, %2 : i32, i32, i32
  }
  func.func @transform_1(%arg0: i32, %arg1: i32, %arg2: i32) -> (i32, i32, i32) {
    %c1_i32 = arith.constant 1 : i32
    %0 = arith.muli %arg1, %c1_i32 : i32
    %1 = arith.addi %0, %arg2 : i32
    %c0_i32 = arith.constant 0 : i32
    %2 = arith.minsi %1, %c0_i32 : i32
    %c0_i32_0 = arith.constant 0 : i32
    %c0_i32_1 = arith.constant 0 : i32
    return %arg0, %c0_i32_0, %2 : i32, i32, i32
  }
  func.func @transform_2(%arg0: i32, %arg1: i32, %arg2: i32) -> (i32, i32, i32) {
    %c1_i32 = arith.constant 1 : i32
    %0 = arith.muli %arg0, %c1_i32 : i32
    %1 = arith.addi %0, %arg1 : i32
    %c0_i32 = arith.constant 0 : i32
    %c0_i32_0 = arith.constant 0 : i32
    %c0_i32_1 = arith.constant 0 : i32
    return %1, %c0_i32, %c0_i32_0 : i32, i32, i32
  }
  func.func @transform_3(%arg0: i32, %arg1: i32, %arg2: i32) -> (i32, i32, i32) {
    %c1_i32 = arith.constant 1 : i32
    %0 = arith.muli %arg0, %c1_i32 : i32
    %1 = arith.addi %0, %arg1 : i32
    %c0_i32 = arith.constant 0 : i32
    %c0_i32_0 = arith.constant 0 : i32
    %c0_i32_1 = arith.constant 0 : i32
    return %1, %c0_i32, %c0_i32_0 : i32, i32, i32
  }
}

</mosaic_0001>

<llo_original>
// kernel: tpu_custom_call.1
$region0: #{tpu_custom_call.1}
  #allocation0 [shape = 'u32[]', space=smem, size = 0x4, offset = 0x4, fixed_abs, tag = 'smem constant byte address 0x4 - core index']
  #allocation1 [shape = 'u32[144,128]{1,0:T(1,128)}', space=vmem, size = 0x12000, scoped, tag = 'internal scratch']
  %s0 = inlined_call_operand.hbm [shape: f32[2,4,256], index: 0, kind: input, shape index: {}]
  %s1 = inlined_call_operand.hbm [shape: f32[2,4,256], index: 1, kind: input, shape index: {}]
  %s2 = inlined_call_operand.vmem [shape: f32[2,4,1], index: 2, kind: output, shape index: {0}]
  %s3 = inlined_call_operand.vmem [shape: f32[2,4,1], index: 3, kind: output, shape index: {1}]
  %4 = xla_tuple %s2, %s3
  %s5 = sld [smem:[#allocation0]]
  $region61: #{tpu_custom_call.1} parent=0
    _
  %s7 = ssub.s32 1, %s5
  %s8 = scalar_select 0, %s7, %s5
  $region1: #{tpu_custom_call.1} parent=0
    #allocation2 [shape = 'u8[8192]{0}', space=vmem, size = 0x2000, scoped, tag = 'input window, operand 0']
    #allocation3 [shape = 's32[2]{0}', space=sflag, size = 0x8, scoped, tag = 'scoped memory for tpu_custom_call.1']
    #allocation4 [shape = 'u8[8192]{0}', space=vmem, size = 0x2000, scoped, tag = 'input window, operand 1']
    #allocation5 [shape = 's32[2]{0}', space=sflag, size = 0x8, scoped, tag = 'scoped memory for tpu_custom_call.1']
    %9 = vsyncpa [#allocation3], 0
    %s10 = scalar_lea.sflag [#allocation3], 1
    %11 = vsyncpa %s10, 0
    %12 = vsyncpa [#allocation5], 0
    %s13 = scalar_lea.sflag [#allocation5], 1
    %14 = vsyncpa %s13, 0
    loop: start=0, step=1, limit=4
    $region2: #{tpu_custom_call.1} parent=1 // loop_pre_header
      _
    $region3: #{tpu_custom_call.1} parent=1 // loop_header
      %s16 = sphi 0, %s20
      %p17 = scmp.ge.s32.totalorder %s16, 4
      %s23 = sphi 0, %s42
      %s24 = sphi 0, %s38
      %s25 = sphi 0, %s34
      %s26 = sphi 0, %s23
      %s27 = sphi 0, %s24
      %s28 = sphi 0, %s25
      %s29 = sphi 0, %s26
      %s30 = sphi 0, %s27
      %s31 = sphi 0, %s28
      %s53 = sphi 0, %s55
      %s56 = sphi 0, %s53
      %s57 = sphi 0, %s56
      %s73 = sphi 0, %s57
      %s87 = sphi 0, %s89
      %s90 = sphi 0, %s87
      %s91 = sphi 0, %s90
      %s107 = sphi 0, %s91
      %s115 = sphi 0, %s117
      %s118 = sphi 0, %s115
      %s119 = sphi 0, %s118
      %s135 = sphi 0, %s119
      %s143 = sphi 0, %s145
      %s146 = sphi 0, %s143
      %s147 = sphi 0, %s146
      %s163 = sphi 0, %s147
    $region4: #{tpu_custom_call.1} parent=1 // loop_header_branch
      %19 = sbr.rel (%p17) target = $region8
    $region5: #{tpu_custom_call.1} parent=1 // loop_body
      %s21 = ssub.s32 %s16, 1
      %s22 = ssub.s32 %s16, 2
      %s32 = sadd.s32 1, %s25
      %p33 = scmp.ge.s32.totalorder %s32, 1
      %s34 = scalar_select %p33, 0, %s32
      %s35 = sadd.s32 1, %s24
      %s36 = scalar_select %p33, %s35, %s24
      %p37 = scmp.ge.s32.totalorder %s36, 1
      %s38 = scalar_select %p37, 0, %s36
      %s39 = sadd.s32 1, %s23
      %s40 = scalar_select %p37, %s39, %s23
      %p41 = scmp.ge.s32.totalorder %s40, 2
      %s42 = scalar_select %p41, 0, %s40
      %s43 = sadd.s32 %s24, %s25
      %p44 = scmp.lt.s32.totalorder %s43, 0
      %s45 = scalar_select %p44, %s43, 0
      %s46 = sadd.s32 %s38, %s34
      %p47 = scmp.lt.s32.totalorder %s46, 0
      %s48 = scalar_select %p47, %s46, 0
      %s49 = ssub.s32 %s23, %s42
      %s50 = ssub.s32 %s45, %s48
      %s51 = sor.u32 %s49, %s50
      %p52 = scmp.eq.s32.totalorder %s51, 0
      %s54 = sadd.s32 %s53, 1
      %s55 = scalar_select %p52, %s53, %s54
      %p58 = pneg %p52
      %p59 = scmp.eq.s32.totalorder %s16, 1
      %p60 = por %p58, %p59
      %p61 = scmp.ne.s32.totalorder %s53, %s56
      %p62 = scmp.eq.s32.totalorder %s16, 0
      %p63 = por %p61, %p62
      %p64 = scmp.ne.s32.totalorder %s53, %s56
      %p65 = scmp.eq.s32.totalorder %s21, 1
      %p66 = por %p64, %p65
      %p67 = scmp.ne.s32.totalorder %s56, %s57
      %p68 = scmp.eq.s32.totalorder %s21, 0
      %p69 = por %p67, %p68
      %p70 = scmp.ne.s32.totalorder %s56, %s57
      %p71 = scmp.eq.s32.totalorder %s22, 1
      %p72 = por %p70, %p71
      %p74 = scmp.ne.s32.totalorder %s57, %s73
      %p75 = scmp.eq.s32.totalorder %s22, 0
      %p76 = por %p74, %p75
      %s77 = sadd.s32 %s24, %s25
      %p78 = scmp.lt.s32.totalorder %s77, 0
      %s79 = scalar_select %p78, %s77, 0
      %s80 = sadd.s32 %s38, %s34
      %p81 = scmp.lt.s32.totalorder %s80, 0
      %s82 = scalar_select %p81, %s80, 0
      %s83 = ssub.s32 %s23, %s42
      %s84 = ssub.s32 %s79, %s82
      %s85 = sor.u32 %s83, %s84
      %p86 = scmp.eq.s32.totalorder %s85, 0
      %s88 = sadd.s32 %s87, 1
      %s89 = scalar_select %p86, %s87, %s88
      %p92 = pneg %p86
      %p93 = scmp.eq.s32.totalorder %s16, 1
      %p94 = por %p92, %p93
      %p95 = scmp.ne.s32.totalorder %s87, %s90
      %p96 = scmp.eq.s32.totalorder %s16, 0
      %p97 = por %p95, %p96
      %p98 = scmp.ne.s32.totalorder %s87, %s90
      %p99 = scmp.eq.s32.totalorder %s21, 1
      %p100 = por %p98, %p99
      %p101 = scmp.ne.s32.totalorder %s90, %s91
      %p102 = scmp.eq.s32.totalorder %s21, 0
      %p103 = por %p101, %p102
      %p104 = scmp.ne.s32.totalorder %s90, %s91
      %p105 = scmp.eq.s32.totalorder %s22, 1
      %p106 = por %p104, %p105
      %p108 = scmp.ne.s32.totalorder %s91, %s107
      %p109 = scmp.eq.s32.totalorder %s22, 0
      %p110 = por %p108, %p109
      %s111 = sadd.s32 %s23, %s24
      %s112 = sadd.s32 %s42, %s38
      %s113 = ssub.s32 %s111, %s112
      %p114 = scmp.eq.s32.totalorder %s113, 0
      %s116 = sadd.s32 %s115, 1
      %s117 = scalar_select %p114, %s115, %s116
      %p120 = pneg %p114
      %p121 = scmp.eq.s32.totalorder %s16, 1
      %p122 = por %p120, %p121
      %p123 = scmp.ne.s32.totalorder %s115, %s118
      %p124 = scmp.eq.s32.totalorder %s16, 0
      %p125 = por %p123, %p124
      %p126 = scmp.ne.s32.totalorder %s115, %s118
      %p127 = scmp.eq.s32.totalorder %s21, 1
      %p128 = por %p126, %p127
      %p129 = scmp.ne.s32.totalorder %s118, %s119
      %p130 = scmp.eq.s32.totalorder %s21, 0
      %p131 = por %p129, %p130
      %p132 = scmp.ne.s32.totalorder %s118, %s119
      %p133 = scmp.eq.s32.totalorder %s22, 1
      %p134 = por %p132, %p133
      %p136 = scmp.ne.s32.totalorder %s119, %s135
      %p137 = scmp.eq.s32.totalorder %s22, 0
      %p138 = por %p136, %p137
      %s139 = sadd.s32 %s23, %s24
      %s140 = sadd.s32 %s42, %s38
      %s141 = ssub.s32 %s139, %s140
      %p142 = scmp.eq.s32.totalorder %s141, 0
      %s144 = sadd.s32 %s143, 1
      %s145 = scalar_select %p142, %s143, %s144
      %p148 = pneg %p142
      %p149 = scmp.eq.s32.totalorder %s16, 1
      %p150 = por %p148, %p149
      %p151 = scmp.ne.s32.totalorder %s143, %s146
      %p152 = scmp.eq.s32.totalorder %s16, 0
      %p153 = por %p151, %p152
      %p154 = scmp.ne.s32.totalorder %s143, %s146
      %p155 = scmp.eq.s32.totalorder %s21, 1
      %p156 = por %p154, %p155
      %p157 = scmp.ne.s32.totalorder %s146, %s147
      %p158 = scmp.eq.s32.totalorder %s21, 0
      %p159 = por %p157, %p158
      %p160 = scmp.ne.s32.totalorder %s146, %s147
      %p161 = scmp.eq.s32.totalorder %s22, 1
      %p162 = por %p160, %p161
      %p164 = scmp.ne.s32.totalorder %s147, %s163
      %p165 = scmp.eq.s32.totalorder %s22, 0
      %p166 = por %p164, %p165
      %p167 = scmp.le.s32.totalorder 1, %s16
      %p168 = scmp.lt.s32.totalorder %s16, 3
      %p169 = pnand %p167, %p168
      %p170 = pneg %p169
      // Predicated region
      $region9: #{tpu_custom_call.1} parent=5 // pred_check
        _
      $region10: #{tpu_custom_call.1} parent=5 // pred_check_branch
        %172 = sbr.rel (%p169) target = $region12
      $region11: #{tpu_custom_call.1} parent=5 // pred_region
        %s173 = ssub.s32 %s16, 1
      $region12: #{tpu_custom_call.1} parent=5 // pred_fallthru
        _
      %p174 = scmp.lt.s32.totalorder %s16, 2
      // Predicated region
      $region13: #{tpu_custom_call.1} parent=5 // pred_check
        %p175 = pneg %p174
      $region14: #{tpu_custom_call.1} parent=5 // pred_check_branch
        %177 = sbr.rel (%p175) target = $region16
      $region15: #{tpu_custom_call.1} parent=5 // pred_region
        // Predicated region
        $region17: #{tpu_custom_call.1} parent=15 // pred_check
          %p178 = pneg %p63
        $region18: #{tpu_custom_call.1} parent=15 // pred_check_branch
          %180 = sbr.rel (%p178) target = $region20
        $region19: #{tpu_custom_call.1} parent=15 // pred_region
          %s181 = sand.u32 %s53, 1
          %s182 = scalar_lea.sflag [#allocation3], %s181
          %s183 = sand.u32 %s53, 1
          %s184 = smul.addr %s183, 8
          %s185 = scalar_lea.vmem [#allocation2], %s184
          %s186 = sadd.s32 %s24, %s25
          %p187 = scmp.lt.s32.totalorder %s186, 0
          %s188 = scalar_select %p187, %s186, 0
          %s189 = smul.u32 2, %s188
          %s191 = ssub.s32 128, 128
          %192 = vsyncadd %s182, %s191
          %s193 = smul.addr %s23, 2
          %s194 = sadd.s32 %s189, %s193
          %s195 = smul.addr %s194, 64
          %s196 = scalar_lea.hbm %s0, %s195
          %s198 = sshll.u32 %s185, 4
          %s199 = int_to_ptr.vmem [resolvable:$true] %s198
          %201 = dma.hbm_to_vmem [thread:$0]  %s196, 128, %s199, %s182
        $region20: #{tpu_custom_call.1} parent=15 // pred_fallthru
          _
        // Predicated region
        $region21: #{tpu_custom_call.1} parent=15 // pred_check
          %p202 = pneg %p97
        $region22: #{tpu_custom_call.1} parent=15 // pred_check_branch
          %204 = sbr.rel (%p202) target = $region24
        $region23: #{tpu_custom_call.1} parent=15 // pred_region
          %s205 = sand.u32 %s87, 1
          %s206 = scalar_lea.sflag [#allocation5], %s205
          %s207 = sand.u32 %s87, 1
          %s208 = smul.addr %s207, 8
          %s209 = scalar_lea.vmem [#allocation4], %s208
          %s210 = sadd.s32 %s24, %s25
          %p211 = scmp.lt.s32.totalorder %s210, 0
          %s212 = scalar_select %p211, %s210, 0
          %s213 = smul.u32 2, %s212
          %s215 = ssub.s32 128, 128
          %216 = vsyncadd %s206, %s215
          %s217 = smul.addr %s23, 2
          %s218 = sadd.s32 %s213, %s217
          %s219 = smul.addr %s218, 64
          %s220 = scalar_lea.hbm %s1, %s219
          %s222 = sshll.u32 %s209, 4
          %s223 = int_to_ptr.vmem [resolvable:$true] %s222
          %225 = dma.hbm_to_vmem [thread:$0]  %s220, 128, %s223, %s206
        $region24: #{tpu_custom_call.1} parent=15 // pred_fallthru
          _
      $region16: #{tpu_custom_call.1} parent=5 // pred_fallthru
        _
      %p226 = scmp.le.s32.totalorder 1, %s16
      %p227 = scmp.lt.s32.totalorder %s16, 3
      %p228 = pnand %p226, %p227
      %p229 = pneg %p228
      // Predicated region
      $region25: #{tpu_custom_call.1} parent=5 // pred_check
        _
      $region26: #{tpu_custom_call.1} parent=5 // pred_check_branch
        %231 = sbr.rel (%p228) target = $region28
      $region27: #{tpu_custom_call.1} parent=5 // pred_region
        %s232 = ssub.s32 %s16, 1
        %s233 = sand.u32 %s56, 1
        %s234 = scalar_lea.sflag [#allocation3], %s233
        %s235 = sand.u32 %s56, 1
        %s236 = smul.addr %s235, 8
        %s237 = scalar_lea.vmem [#allocation2], %s236
        // Predicated region
        $region29: #{tpu_custom_call.1} parent=27 // pred_check
          %p238 = pneg %p69
        $region30: #{tpu_custom_call.1} parent=27 // pred_check_branch
          %240 = sbr.rel (%p238) target = $region32
        $region31: #{tpu_custom_call.1} parent=27 // pred_region
          %241 = dma.done %s234, 128
        $region32: #{tpu_custom_call.1} parent=27 // pred_fallthru
          _
        %s242 = sand.u32 %s90, 1
        %s243 = scalar_lea.sflag [#allocation5], %s242
        %s244 = sand.u32 %s90, 1
        %s245 = smul.addr %s244, 8
        %s246 = scalar_lea.vmem [#allocation4], %s245
        // Predicated region
        $region33: #{tpu_custom_call.1} parent=27 // pred_check
          %p247 = pneg %p103
        $region34: #{tpu_custom_call.1} parent=27 // pred_check_branch
          %249 = sbr.rel (%p247) target = $region36
        $region35: #{tpu_custom_call.1} parent=27 // pred_region
          %250 = dma.done %s243, 128
        $region36: #{tpu_custom_call.1} parent=27 // pred_fallthru
          _
        %s251 = sand.u32 %s56, 1
        %s252 = scalar_lea.sflag [#allocation3], %s251
        %s253 = sand.u32 %s56, 1
        %s254 = smul.addr %s253, 8
        %s255 = scalar_lea.vmem [#allocation2], %s254
        %p256 = pneg %p69
        %p257 = pneg %p66
        %s258 = sand.u32 %s90, 1
        %s259 = scalar_lea.sflag [#allocation5], %s258
        %s260 = sand.u32 %s90, 1
        %s261 = smul.addr %s260, 8
        %s262 = scalar_lea.vmem [#allocation4], %s261
        %p263 = pneg %p103
        %p264 = pneg %p100
        %p265 = pneg %p131
        %p266 = pneg %p128
        %s267 = sadd.s32 %s26, %s27
        %p268 = scmp.lt.s32.totalorder %s267, 1
        %s269 = scalar_select %p268, %s267, 1
        %s270 = smul.addr %s269, 4
        %s271 = scalar_lea.vmem %s2, %s270
        %p272 = pneg %p159
        %p273 = pneg %p156
        %s274 = sadd.s32 %s26, %s27
        %p275 = scmp.lt.s32.totalorder %s274, 1
        %s276 = scalar_select %p275, %s274, 1
        %s277 = smul.addr %s276, 4
        %s278 = scalar_lea.vmem %s3, %s277
        %s279 = sadd.s32 %s27, %s28
        %p280 = scmp.lt.s32.totalorder %s279, 0
        %s281 = scalar_select %p280, %s279, 0
        %s282 = smul.u32 2, %s281
        %s283 = sadd.s32 %s27, %s28
        %p284 = scmp.lt.s32.totalorder %s283, 0
        %s285 = scalar_select %p284, %s283, 0
        %s286 = smul.u32 2, %s285
        %s287 = sadd.s32 %s26, %s27
        %p288 = scmp.lt.s32.totalorder %s287, 1
        %s289 = scalar_select %p288, %s287, 1
        %s290 = smul.addr %s289, 4
        %s291 = scalar_lea.vmem %s2, %s290
        %s292 = sadd.s32 %s26, %s27
        %s293 = sadd.s32 %s26, %s27
        %p294 = scmp.lt.s32.totalorder %s293, 1
        %s295 = scalar_select %p294, %s293, 1
        %s296 = smul.addr %s295, 4
        %s297 = scalar_lea.vmem %s3, %s296
        %s298 = sadd.s32 %s26, %s27
        %p299 = scmp.eq.s32.totalorder %s28, 0
        // Predicated region
        $region37: #{tpu_custom_call.1} parent=27 // pred_check
          %p300 = pneg %p299
        $region38: #{tpu_custom_call.1} parent=27 // pred_check_branch
          %302 = sbr.rel (%p300) target = $region40
        $region39: #{tpu_custom_call.1} parent=27 // pred_region
          %vm303 = vcmask 3072
          %304 = vst.msk [vmem:[%s291] sm:$0xf] %vm303, 0.0
          %305 = vst.msk [vmem:[%s297] sm:$0xf] %vm303, 0.0
        $region40: #{tpu_custom_call.1} parent=27 // pred_fallthru
          _
        %s306 = sadd.s32 %s27, %s28
        %s307 = smul.u32 %s306, 256
        %v308 = vlaneseq
        %v309 = vand.u32 %v308, 127
        %v310 = vadd.s32 %v309, 128
        %v311 = vstv %s307
        %v312 = vadd.s32 %v311, %v309
        %v313 = vadd.s32 %v311, %v310
        %vm314 = vcmp.lt.s32.totalorder %v312, 256
        %vm315 = vcmp.lt.s32.totalorder %v313, 256
        %v316 = vld [vmem:[%s237] sm:$0xff]
        %v317 = vld [vmem:[%s246] sm:$0xff]
        %v318 = vld [vmem:[%s291] sm:$0xf]
        %v319 = vmul.f32 %v317, %v316
        %v320 = vsel %vm314, 1, 0
        %v321 = vsel %vm315, 1, 0
        %vm322 = vcmp.eq.s32.totalorder %v320, 1
        %vm323 = vcmp.eq.s32.totalorder %v321, 1
        %v325 = vcombine.high %v319, %v319
        %v327 = vsel %vm322, %v319, 0.0
        %v328 = vsel %vm323, %v325, 0.0
        %vm329 = vcmask 1043456
        %v330 = vsel %vm329, %v327, 0.0
        %v331 = vsel %vm329, %v328, 0.0
        %v332 = vadd.f32 %v330, %v331
        %333 = vadd.xlane.f32.xlu0 %v332
        %v334 = vpop.xlane.xlu0 %333
        %v335 = vadd.f32 %v318, %v334
        %vm336 = vcmask 3072
        %337 = vst.msk [vmem:[%s291] sm:$0xf] %vm336, %v335
        %v338 = vld [vmem:[%s297] sm:$0xf]
        %v340 = vcombine.high %v317, %v317
        %v342 = vsel %vm322, %v317, 0.0
        %v343 = vsel %vm323, %v340, 0.0
        %v344 = vsel %vm329, %v342, 0.0
        %v345 = vsel %vm329, %v343, 0.0
        %v346 = vadd.f32 %v344, %v345
        %347 = vadd.xlane.f32.xlu0 %v346
        %v348 = vpop.xlane.xlu0 %347
        %v349 = vadd.f32 %v338, %v348
        %350 = vst.msk [vmem:[%s297] sm:$0xf] %vm336, %v349
        %s351 = sadd.s32 %s26, %s27
        %p352 = scmp.lt.s32.totalorder %s351, 1
        %s353 = scalar_select %p352, %s351, 1
        %s354 = smul.addr %s353, 4
        %s355 = scalar_lea.vmem %s2, %s354
        %s356 = sadd.s32 %s26, %s27
        %p357 = scmp.lt.s32.totalorder %s356, 1
        %s358 = scalar_select %p357, %s356, 1
        %s359 = smul.addr %s358, 4
        %s360 = scalar_lea.vmem %s3, %s359
        // Predicated region
        $region41: #{tpu_custom_call.1} parent=27 // pred_check
          %p361 = pneg %p128
        $region42: #{tpu_custom_call.1} parent=27 // pred_check_branch
          %363 = sbr.rel (%p361) target = $region44
        $region43: #{tpu_custom_call.1} parent=27 // pred_region
          %s364 = sadd.s32 %s26, %s27
        $region44: #{tpu_custom_call.1} parent=27 // pred_fallthru
          _
        // Predicated region
        $region45: #{tpu_custom_call.1} parent=27 // pred_check
          %p365 = pneg %p156
        $region46: #{tpu_custom_call.1} parent=27 // pred_check_branch
          %367 = sbr.rel (%p365) target = $region48
        $region47: #{tpu_custom_call.1} parent=27 // pred_region
          %s368 = sadd.s32 %s26, %s27
        $region48: #{tpu_custom_call.1} parent=27 // pred_fallthru
          _
      $region28: #{tpu_custom_call.1} parent=5 // pred_fallthru
        _
      %p369 = scmp.le.s32.totalorder 2, %s16
      // Predicated region
      $region49: #{tpu_custom_call.1} parent=5 // pred_check
        %p370 = pneg %p369
      $region50: #{tpu_custom_call.1} parent=5 // pred_check_branch
        %372 = sbr.rel (%p370) target = $region52
      $region51: #{tpu_custom_call.1} parent=5 // pred_region
        %s373 = ssub.s32 %s16, 2
        // Predicated region
        $region53: #{tpu_custom_call.1} parent=51 // pred_check
          %p374 = pneg %p134
        $region54: #{tpu_custom_call.1} parent=51 // pred_check_branch
          %376 = sbr.rel (%p374) target = $region56
        $region55: #{tpu_custom_call.1} parent=51 // pred_region
          %s377 = sadd.s32 %s29, %s30
          %p378 = scmp.lt.s32.totalorder %s377, 1
          %s379 = scalar_select %p378, %s377, 1
          %s380 = smul.addr %s379, 4
          %s381 = scalar_lea.vmem %s2, %s380
        $region56: #{tpu_custom_call.1} parent=51 // pred_fallthru
          _
        // Predicated region
        $region57: #{tpu_custom_call.1} parent=51 // pred_check
          %p382 = pneg %p162
        $region58: #{tpu_custom_call.1} parent=51 // pred_check_branch
          %384 = sbr.rel (%p382) target = $region60
        $region59: #{tpu_custom_call.1} parent=51 // pred_region
          %s385 = sadd.s32 %s29, %s30
          %p386 = scmp.lt.s32.totalorder %s385, 1
          %s387 = scalar_select %p386, %s385, 1
          %s388 = smul.addr %s387, 4
          %s389 = scalar_lea.vmem %s3, %s388
        $region60: #{tpu_custom_call.1} parent=51 // pred_fallthru
          _
      $region52: #{tpu_custom_call.1} parent=5 // pred_fallthru
        _
    $region6: #{tpu_custom_call.1} parent=1 // loop_footer
      %s20 = sadd.s32 1, %s16
    $region7: #{tpu_custom_call.1} parent=1 // loop_footer_branch
      %15 = sbr.rel target = $region3
    $region8: #{tpu_custom_call.1} parent=1 // loop_exit
      _
    %390 = vsyncpa [#allocation3], 1
    %s391 = scalar_lea.sflag [#allocation3], 1
    %392 = vsyncpa %s391, 1
    %393 = vsyncpa [#allocation5], 1
    %s394 = scalar_lea.sflag [#allocation5], 1
    %395 = vsyncpa %s394, 1

</llo_original>
